<compile_context>
chip_gen: v6e
topology: v6e:2x2x1
jax: 0.10.0
libtpu: 0.0.40
codegen_flags: <defaults>
</compile_context>

<pallas_src>
import jax
import jax.numpy as jnp
from jax.experimental import pallas as pl
from jax.experimental.pallas import tpu as pltpu


def _round_up(n, m):
    return ((n + m - 1) // m) * m


def policy_kernel(x_ref, w1_ref, w2_ref, b_ref, o_ref):
    """fc1 -> ReLU -> fc2 for one (TILE_B, s_size) batch tile.

    w1: (s_size, H_PAD), w2: (H_PAD, A_PAD)  -- zero-padded, lane-dense.
    b:  (2, max(H_PAD, A_PAD))               -- row 0 = b1, row 1 = b2 (padded).
    o:  (TILE_B, a_size)                     -- native (narrow) output width.
    """
    h_pad = w1_ref.shape[1]
    a_pad = w2_ref.shape[1]
    a_size = o_ref.shape[1]

    x = x_ref[...]                                                   # (TILE_B, s_size)
    h = jnp.dot(x, w1_ref[...], preferred_element_type=jnp.float32)  # (TILE_B, H_PAD)
    h = jnp.maximum(h + b_ref[0:1, :h_pad], 0.0)                     # bias + ReLU, lane-dense
    y = jnp.dot(h, w2_ref[...], preferred_element_type=jnp.float32)  # (TILE_B, A_PAD)
    y = y + b_ref[1:2, :a_pad]
    # Only the first a_size lanes go back to HBM; padded lanes stay in VMEM.
    o_ref[...] = y[:, :a_size].astype(o_ref.dtype)


def policy_forward(x, w1, b1, w2, b2, *, tile_b=4096):
    """x: (B, s_size) f32 -> (B, a_size) f32."""
    B, s_size = x.shape
    h_size = w1.shape[1]
    a_size = w2.shape[1]

    H_PAD = _round_up(max(h_size, 1), 128)
    A_PAD = _round_up(max(a_size, 1), 128)
    BW = max(H_PAD, A_PAD)

    # --- zero-pad parameters (exact: zero cols/rows/bias entries contribute 0) ---
    w1p = jnp.zeros((s_size, H_PAD), jnp.float32).at[:, :h_size].set(w1)
    w2p = jnp.zeros((H_PAD, A_PAD), jnp.float32).at[:h_size, :a_size].set(w2)
    bp = jnp.zeros((2, BW), jnp.float32)
    bp = bp.at[0, :h_size].set(b1.reshape(-1))
    bp = bp.at[1, :a_size].set(b2.reshape(-1))

    # --- batch tile: big (overhead amortization) but leaving >= 2 grid steps
    #     when B allows it (megacore sharding on v7x).  Multiple of the f32
    #     sublane tile (8); Pallas masks the partial edge block, so no batch
    #     padding or output cropping is needed on the host side. ------------
    tile_req = _round_up(max(tile_b, 8), 8)
    half_b = _round_up(pl.cdiv(B, 2), 8)
    tile = max(8, min(tile_req, half_b))
    grid = (pl.cdiv(B, tile),)

    cost = pl.CostEstimate(
        flops=2 * B * (s_size * H_PAD + H_PAD * A_PAD),
        transcendentals=0,
        bytes_accessed=4 * (B * s_size + B * a_size
                            + s_size * H_PAD + H_PAD * A_PAD + 2 * BW),
    )

    out = pl.pallas_call(
        policy_kernel,
        out_shape=jax.ShapeDtypeStruct((B, a_size), jnp.float32),
        grid_spec=pltpu.PrefetchScalarGridSpec(
            num_scalar_prefetch=0,
            grid=grid,
            in_specs=[
                # activations stream over the grid (double-buffered)
                pl.BlockSpec((tile, s_size), lambda i: (i, 0)),
                # constant-index params: VMEM-resident, single-buffered
                pl.BlockSpec((s_size, H_PAD), lambda i: (0, 0),
                             pipeline_mode=pl.Buffered(1)),
                pl.BlockSpec((H_PAD, A_PAD), lambda i: (0, 0),
                             pipeline_mode=pl.Buffered(1)),
                pl.BlockSpec((2, BW), lambda i: (0, 0),
                             pipeline_mode=pl.Buffered(1)),
            ],
            out_specs=pl.BlockSpec((tile, a_size), lambda i: (i, 0)),
        ),
        compiler_params=pltpu.CompilerParams(
            dimension_semantics=("parallel",),   # batch axis -> megacore sharding on v7x
            vmem_limit_bytes=32 << 20,           # ~11 MB needed at tile=4096; safe on v5e/v6e/v7x
        ),
        cost_estimate=cost,
    )(x, w1p, w2p, bp)

    return out


def init_params(key, s_size=6, h_size=32, a_size=3):
    """Deterministic init mimicking nn.Linear's uniform(-1/sqrt(fan_in), 1/sqrt(fan_in))."""
    k1, k2, k3, k4 = jax.random.split(key, 4)
    bound1 = 1.0 / jnp.sqrt(jnp.float32(s_size))
    bound2 = 1.0 / jnp.sqrt(jnp.float32(h_size))
    w1 = jax.random.uniform(k1, (s_size, h_size), jnp.float32, -bound1, bound1)
    b1 = jax.random.uniform(k2, (1, h_size), jnp.float32, -bound1, bound1)
    w2 = jax.random.uniform(k3, (h_size, a_size), jnp.float32, -bound2, bound2)
    b2 = jax.random.uniform(k4, (1, a_size), jnp.float32, -bound2, bound2)
    return w1, b1, w2, b2


# TODO(synk): Policy.act()'s epsilon-greedy sampling / argmax is host-side control
# logic, not part of the forward pass; it is intentionally not a kernel.

if __name__ == "__main__":
    key = jax.random.PRNGKey(0)
    kx, kp = jax.random.split(key)

    batch, s_size, h_size, a_size = 2, 6, 32, 3
    x = jax.random.normal(kx, (batch, s_size), jnp.float32)
    w1, b1, w2, b2 = init_params(kp, s_size, h_size, a_size)

    def ref_fn(xv):
        return jnp.maximum(xv @ w1 + b1, 0.0) @ w2 + b2

    # 1) Tiny batch (single partial block).
    out = jax.block_until_ready(policy_forward(x, w1, b1, w2, b2))
    assert out.shape == (batch, a_size)
    assert jnp.allclose(out, ref_fn(x), atol=1e-5, rtol=1e-5)

    # 2) Multiple grid steps with a forced tiny tile (5 steps of 8 rows).
    xb = jax.random.normal(jax.random.PRNGKey(1), (40, s_size), jnp.float32)
    outb = jax.block_until_ready(policy_forward(xb, w1, b1, w2, b2, tile_b=8))
    assert outb.shape == (40, a_size)
    assert jnp.allclose(outb, ref_fn(xb), atol=1e-5, rtol=1e-5)

    # 3) Default tiling path: >= 2 grid steps with a masked partial edge block.
    xc = jax.random.normal(jax.random.PRNGKey(2), (300, s_size), jnp.float32)
    outc = jax.block_until_ready(policy_forward(xc, w1, b1, w2, b2))
    assert outc.shape == (300, a_size)
    assert jnp.allclose(outc, ref_fn(xc), atol=1e-5, rtol=1e-5)

    print("KERNEL_OK")
</pallas_src>

<mosaic_0001>
module attributes {stable_mosaic.version = 11 : i64} {
  func.func @policy_kernel(%arg0: i32, %arg1: memref<8x6xf32, #tpu.memory_space<vmem>>, %arg2: memref<6x128xf32, #tpu.memory_space<vmem>>, %arg3: memref<128x128xf32, #tpu.memory_space<vmem>>, %arg4: memref<2x128xf32, #tpu.memory_space<vmem>>, %arg5: memref<8x3xf32, #tpu.memory_space<vmem>>) attributes {dimension_semantics = [#tpu.dimension_semantics<parallel>], iteration_bounds = array<i64: 1>, scalar_prefetch = 0 : i64, scratch_operands = 0 : i64, tpu.core_type = #tpu.core_type<tc>, window_params = [{transform_indices = @transform_0, window_bounds = array<i64: 8, 6>}, {pipeline_mode = #tpu.pipeline_mode<synchronous>, transform_indices = @transform_1, window_bounds = array<i64: 6, 128>}, {pipeline_mode = #tpu.pipeline_mode<synchronous>, transform_indices = @transform_2, window_bounds = array<i64: 128, 128>}, {pipeline_mode = #tpu.pipeline_mode<synchronous>, transform_indices = @transform_3, window_bounds = array<i64: 2, 128>}, {transform_indices = @transform_4, window_bounds = array<i64: 8, 3>}]} {
    %c0 = arith.constant 0 : index
    %c0_0 = arith.constant 0 : index
    %0 = vector.load %arg1[%c0, %c0_0] : memref<8x6xf32, #tpu.memory_space<vmem>>, vector<8x6xf32>
    %c0_1 = arith.constant 0 : index
    %c0_2 = arith.constant 0 : index
    %1 = vector.load %arg2[%c0_1, %c0_2] : memref<6x128xf32, #tpu.memory_space<vmem>>, vector<6x128xf32>
    %cst = arith.constant dense<0.000000e+00> : vector<8x128xf32>
    %2 = tpu.matmul %0, %1, %cst {dimension_numbers = #tpu.dot_dimension_numbers<[1], [0], [0], [1], [0, 0, 1, 1], [], []>} : vector<8x6xf32>, vector<6x128xf32>, vector<8x128xf32> -> vector<8x128xf32>
    %c0_3 = arith.constant 0 : index
    %c0_4 = arith.constant 0 : index
    %3 = vector.load %arg4[%c0_3, %c0_4] : memref<2x128xf32, #tpu.memory_space<vmem>>, vector<1x128xf32>
    %4 = vector.broadcast %3 : vector<1x128xf32> to vector<8x128xf32>
    %5 = arith.addf %2, %4 : vector<8x128xf32>
    %cst_5 = arith.constant 0.000000e+00 : f32
    %6 = vector.broadcast %cst_5 : f32 to vector<8x128xf32>
    %7 = arith.maximumf %5, %6 : vector<8x128xf32>
    %c0_6 = arith.constant 0 : index
    %c0_7 = arith.constant 0 : index
    %8 = vector.load %arg3[%c0_6, %c0_7] : memref<128x128xf32, #tpu.memory_space<vmem>>, vector<128x128xf32>
    %cst_8 = arith.constant dense<0.000000e+00> : vector<8x128xf32>
    %9 = tpu.matmul %7, %8, %cst_8 {dimension_numbers = #tpu.dot_dimension_numbers<[1], [0], [0], [1], [0, 0, 1, 1], [], []>} : vector<8x128xf32>, vector<128x128xf32>, vector<8x128xf32> -> vector<8x128xf32>
    %c1 = arith.constant 1 : index
    %c0_9 = arith.constant 0 : index
    %10 = vector.load %arg4[%c1, %c0_9] : memref<2x128xf32, #tpu.memory_space<vmem>>, vector<1x128xf32>
    %11 = vector.broadcast %10 : vector<1x128xf32> to vector<8x128xf32>
    %12 = arith.addf %9, %11 : vector<8x128xf32>
    %13 = vector.extract_strided_slice %12 {offsets = [0, 0], sizes = [8, 3], strides = [1, 1]} : vector<8x128xf32> to vector<8x3xf32>
    %c0_10 = arith.constant 0 : index
    %c0_11 = arith.constant 0 : index
    %14 = vector.load %arg5[%c0_10, %c0_11] : memref<8x3xf32, #tpu.memory_space<vmem>>, vector<8x3xf32>
    tpu.vector_store %arg5[%c0_10, %c0_11], %13 {strides = array<i32>} : memref<8x3xf32, #tpu.memory_space<vmem>>, vector<8x3xf32>,
    return
  }
  func.func @transform_0(%arg0: i32) -> (i32, i32) {
    %c0_i32 = arith.constant 0 : i32
    %c0_i32_0 = arith.constant 0 : i32
    return %arg0, %c0_i32 : i32, i32
  }
  func.func @transform_1(%arg0: i32) -> (i32, i32) {
    %c0_i32 = arith.constant 0 : i32
    %c0_i32_0 = arith.constant 0 : i32
    %c0_i32_1 = arith.constant 0 : i32
    return %c0_i32, %c0_i32_0 : i32, i32
  }
  func.func @transform_2(%arg0: i32) -> (i32, i32) {
    %c0_i32 = arith.constant 0 : i32
    %c0_i32_0 = arith.constant 0 : i32
    %c0_i32_1 = arith.constant 0 : i32
    return %c0_i32, %c0_i32_0 : i32, i32
  }
  func.func @transform_3(%arg0: i32) -> (i32, i32) {
    %c0_i32 = arith.constant 0 : i32
    %c0_i32_0 = arith.constant 0 : i32
    %c0_i32_1 = arith.constant 0 : i32
    return %c0_i32, %c0_i32_0 : i32, i32
  }
  func.func @transform_4(%arg0: i32) -> (i32, i32) {
    %c0_i32 = arith.constant 0 : i32
    %c0_i32_0 = arith.constant 0 : i32
    return %arg0, %c0_i32 : i32, i32
  }
}

</mosaic_0001>

<llo_original>
// kernel: tpu_custom_call.1
$region0: #{tpu_custom_call.1}
  #allocation0 [shape = 'u32[]', space=smem, size = 0x4, offset = 0x4, fixed_abs, tag = 'smem constant byte address 0x4 - core index']
  #allocation1 [shape = 'u32[144,128]{1,0:T(1,128)}', space=vmem, size = 0x12000, scoped, tag = 'internal scratch']
  %s0 = inlined_call_operand.hbm [shape: f32[2,6], index: 0, kind: input, shape index: {}]
  %s1 = inlined_call_operand.hbm [shape: f32[6,128], index: 1, kind: input, shape index: {}]
  %s2 = inlined_call_operand.hbm [shape: f32[128,128], index: 2, kind: input, shape index: {}]
  %s3 = inlined_call_operand.vmem [shape: f32[2,128], index: 3, kind: input, shape index: {}]
  %s4 = inlined_call_operand.hbm [shape: f32[2,3], index: 4, kind: output, shape index: {}]
  %s5 = sld [smem:[#allocation0]]
  $region38: #{tpu_custom_call.1} parent=0
    _
  %s7 = ssub.s32 1, %s5
  %s8 = scalar_select 0, %s7, %s5
  $region1: #{tpu_custom_call.1} parent=0
    #allocation2 [shape = 'u8[4096]{0}', space=vmem, size = 0x1000, scoped, tag = 'input window, operand 0, single buffered']
    #allocation3 [shape = 's32[1]{0}', space=sflag, size = 0x4, scoped, tag = 'scoped memory for tpu_custom_call.1']
    #allocation4 [shape = 's32[1]{0}', space=sflag, size = 0x4, scoped, tag = 'scoped memory for tpu_custom_call.1']
    #allocation5 [shape = 'u8[4096]{0}', space=vmem, size = 0x1000, scoped, tag = 'input window, operand 1, single buffered']
    #allocation6 [shape = 's32[1]{0}', space=sflag, size = 0x4, scoped, tag = 'scoped memory for tpu_custom_call.1']
    #allocation7 [shape = 'u8[65536]{0}', space=vmem, size = 0x10000, scoped, tag = 'input window, operand 2, single buffered']
    #allocation8 [shape = 'u8[4096]{0}', space=vmem, size = 0x1000, scoped, tag = 'output window, operand 0, single buffered']
    %9 = vsyncpa [#allocation3], 0
    %10 = vsyncpa [#allocation6], 0
    %11 = vsyncpa [#allocation4], 0
    // Predicated region
    $region2: #{tpu_custom_call.1} parent=1 // pred_check
      _
    $region3: #{tpu_custom_call.1} parent=1 // pred_check_branch
      %13 = sbr.rel (0) target = $region5
    $region4: #{tpu_custom_call.1} parent=1 // pred_region
      %s15 = ssub.s32 128, 32
      %16 = vsyncadd [#allocation3], %s15
      %s17 = sshll.u32 [#allocation2], 4
      %s18 = int_to_ptr.vmem [resolvable:$true] %s17
      %23 = dma.hbm_to_vmem [thread:$0]  %s0, 32, %s18, [#allocation3], 32, 32, 2
    $region5: #{tpu_custom_call.1} parent=1 // pred_fallthru
      _
    // Predicated region
    $region6: #{tpu_custom_call.1} parent=1 // pred_check
      _
    $region7: #{tpu_custom_call.1} parent=1 // pred_check_branch
      %25 = sbr.rel (0) target = $region9
    $region8: #{tpu_custom_call.1} parent=1 // pred_region
      %s27 = ssub.s32 128, 128
      %28 = vsyncadd [#allocation6], %s27
      %s30 = sshll.u32 [#allocation5], 4
      %s31 = int_to_ptr.vmem [resolvable:$true] %s30
      %33 = dma.hbm_to_vmem [thread:$0]  %s1, 128, %s31, [#allocation6]
    $region9: #{tpu_custom_call.1} parent=1 // pred_fallthru
      _
    // Predicated region
    $region10: #{tpu_custom_call.1} parent=1 // pred_check
      _
    $region11: #{tpu_custom_call.1} parent=1 // pred_check_branch
      %35 = sbr.rel (0) target = $region13
    $region12: #{tpu_custom_call.1} parent=1 // pred_region
      %s37 = ssub.s32 2048, 2048
      %38 = vsyncadd [#allocation6], %s37
      %s39 = sshll.u32 [#allocation7], 4
      %s40 = int_to_ptr.vmem [resolvable:$true] %s39
      %45 = dma.hbm_to_vmem [thread:$0]  %s2, 2048, %s40, [#allocation6], 128, 128, 8
    $region13: #{tpu_custom_call.1} parent=1 // pred_fallthru
      _
    // Predicated region
    $region14: #{tpu_custom_call.1} parent=1 // pred_check
      _
    $region15: #{tpu_custom_call.1} parent=1 // pred_check_branch
      %47 = sbr.rel (0) target = $region17
    $region16: #{tpu_custom_call.1} parent=1 // pred_region
      _
    $region17: #{tpu_custom_call.1} parent=1 // pred_fallthru
      _
    // Predicated region
    $region18: #{tpu_custom_call.1} parent=1 // pred_check
      _
    $region19: #{tpu_custom_call.1} parent=1 // pred_check_branch
      %49 = sbr.rel (0) target = $region21
    $region20: #{tpu_custom_call.1} parent=1 // pred_region
      %50 = dma.done [#allocation3], 128
    $region21: #{tpu_custom_call.1} parent=1 // pred_fallthru
      _
    // Predicated region
    $region22: #{tpu_custom_call.1} parent=1 // pred_check
      _
    $region23: #{tpu_custom_call.1} parent=1 // pred_check_branch
      %52 = sbr.rel (0) target = $region25
    $region24: #{tpu_custom_call.1} parent=1 // pred_region
      %53 = dma.done [#allocation6], 128
    $region25: #{tpu_custom_call.1} parent=1 // pred_fallthru
      _
    // Predicated region
    $region26: #{tpu_custom_call.1} parent=1 // pred_check
      _
    $region27: #{tpu_custom_call.1} parent=1 // pred_check_branch
      %55 = sbr.rel (0) target = $region29
    $region28: #{tpu_custom_call.1} parent=1 // pred_region
      %56 = dma.done [#allocation6], 2048
    $region29: #{tpu_custom_call.1} parent=1 // pred_fallthru
      _
    %v57 = vld [vmem:[#allocation2] sm:$0xff]
    %v58 = vld [vmem:[#allocation5] sm:$0x3f]
    %v59 = vld [vmem:[%s3] sm:$0x1]
    %v60 = vlaneseq
    %v61 = vshrl.u32 %v60, 7
    %v62 = vsub.s32 0, %v61
    %v63 = vrot.slane %v59, %v62
    %vm64 = vcmask 48128
    %v66 = vsel %vm64, %v57, 0
    %vm68 = vcmask 1045504
    %v70 = vsel %vm68, %v58, 0
    %72 = vmatprep.subr.mxu0 0.0
    %73 = vmatpush1.msra.mxu0 0.0
    %74 = vmatprep.subr.mxu0 0.0
    %75 = vmatpush1.msra.mxu0 0.0
    %76 = vmatprep.subr.mxu0 0.0
    %77 = vmatpush1.msra.mxu0 0.0
    %78 = vmatprep.subr.mxu0 0.0
    %79 = vmatpush1.msra.mxu0 0.0
    %80 = vmatprep.subr.mxu0 0.0
    %81 = vmatpush1.msra.mxu0 0.0
    %82 = vmatprep.subr.mxu0 0.0
    %83 = vmatpush1.msra.mxu0 0.0
    %84 = vmatprep.subr.mxu0 0.0
    %85 = vmatpush1.msra.mxu0 0.0
    %86 = vmatprep.subr.mxu0 0.0
    %87 = vmatpush1.msra.mxu0 0.0
    %88 = vmatprep.subr.mxu0 0.0
    %89 = vmatpush1.msra.mxu0 0.0
    %90 = vmatprep.subr.mxu0 0.0
    %91 = vmatpush1.msra.mxu0 0.0
    %92 = vmatprep.subr.mxu0 0.0
    %93 = vmatpush1.msra.mxu0 0.0
    %94 = vmatprep.subr.mxu0 0.0
    %95 = vmatpush1.msra.mxu0 0.0
    %96 = vmatprep.subr.mxu0 0.0
    %97 = vmatpush1.msra.mxu0 0.0
    %98 = vmatprep.subr.mxu0 0.0
    %99 = vmatpush1.msra.mxu0 0.0
    %100 = vmatprep.subr.mxu0 0.0
    %101 = vmatpush1.msra.mxu0 0.0
    %102 = vmatprep.subr.mxu0 0.0
    %103 = vmatpush1.msra.mxu0 %v70
    %104 = vmatprep.subr.mxu0 0.0
    %105 = vmatpush2.msra.mxu0 0.0
    %106 = vmatprep.subr.mxu0 0.0
    %107 = vmatpush2.msra.mxu0 0.0
    %108 = vmatprep.subr.mxu0 0.0
    %109 = vmatpush2.msra.mxu0 0.0
    %110 = vmatprep.subr.mxu0 0.0
    %111 = vmatpush2.msra.mxu0 0.0
    %112 = vmatprep.subr.mxu0 0.0
    %113 = vmatpush2.msra.mxu0 0.0
    %114 = vmatprep.subr.mxu0 0.0
    %115 = vmatpush2.msra.mxu0 0.0
    %116 = vmatprep.subr.mxu0 0.0
    %117 = vmatpush2.msra.mxu0 0.0
    %118 = vmatprep.subr.mxu0 0.0
    %119 = vmatpush2.msra.mxu0 0.0
    %120 = vmatprep.subr.mxu0 0.0
    %121 = vmatpush2.msra.mxu0 0.0
    %122 = vmatprep.subr.mxu0 0.0
    %123 = vmatpush2.msra.mxu0 0.0
    %124 = vmatprep.subr.mxu0 0.0
    %125 = vmatpush2.msra.mxu0 0.0
    %126 = vmatprep.subr.mxu0 0.0
    %127 = vmatpush2.msra.mxu0 0.0
    %128 = vmatprep.subr.mxu0 0.0
    %129 = vmatpush2.msra.mxu0 0.0
    %130 = vmatprep.subr.mxu0 0.0
    %131 = vmatpush2.msra.mxu0 0.0
    %132 = vmatprep.subr.mxu0 0.0
    %133 = vmatpush2.msra.mxu0 0.0
    %134 = vmatprep.subr.mxu0 0.0
    %135 = vmatpush2.msra.mxu0 0.0
    %136 = vmatprep.mubr.f32.mxu0 0.0
    %137 = vmatmul.mubr.f32.gmra.mxu0 %v66
    %v138 = vpop.f32.mrf.mxu0
    %v139 = vadd.f32 %v63, %v138
    %v140 = vpop.f32.mrf.mxu0
    %141 = vdwg.mxu0
    %v142 = vmax.f32 %v139, 0.0
    %v143 = vld [vmem:[#allocation7] sm:$0xff]
    %v144 = vld [vmem:[#allocation7 + $0x8] sm:$0xff]
    %v145 = vld [vmem:[#allocation7 + $0x10] sm:$0xff]
    %v146 = vld [vmem:[#allocation7 + $0x18] sm:$0xff]
    %v147 = vld [vmem:[#allocation7 + $0x20] sm:$0xff]
    %v148 = vld [vmem:[#allocation7 + $0x28] sm:$0xff]
    %v149 = vld [vmem:[#allocation7 + $0x30] sm:$0xff]
    %v150 = vld [vmem:[#allocation7 + $0x38] sm:$0xff]
    %v151 = vld [vmem:[#allocation7 + $0x40] sm:$0xff]
    %v152 = vld [vmem:[#allocation7 + $0x48] sm:$0xff]
    %v153 = vld [vmem:[#allocation7 + $0x50] sm:$0xff]
    %v154 = vld [vmem:[#allocation7 + $0x58] sm:$0xff]
    %v155 = vld [vmem:[#allocation7 + $0x60] sm:$0xff]
    %v156 = vld [vmem:[#allocation7 + $0x68] sm:$0xff]
    %v157 = vld [vmem:[#allocation7 + $0x70] sm:$0xff]
    %v158 = vld [vmem:[#allocation7 + $0x78] sm:$0xff]
    %v159 = vld [vmem:[%s3 + $0x1] sm:$0x1]
    %v160 = vlaneseq
    %v161 = vshrl.u32 %v160, 7
    %v162 = vsub.s32 0, %v161
    %v163 = vrot.slane %v159, %v162
    %164 = vmatprep.subr.mxu0 0.0
    %165 = vmatpush1.msra.mxu0 %v158
    %166 = vmatprep.subr.mxu0 0.0
    %167 = vmatpush1.msra.mxu0 %v157
    %168 = vmatprep.subr.mxu0 0.0
    %169 = vmatpush1.msra.mxu0 %v156
    %170 = vmatprep.subr.mxu0 0.0
    %171 = vmatpush1.msra.mxu0 %v155
    %172 = vmatprep.subr.mxu0 0.0
    %173 = vmatpush1.msra.mxu0 %v154
    %174 = vmatprep.subr.mxu0 0.0
    %175 = vmatpush1.msra.mxu0 %v153
    %176 = vmatprep.subr.mxu0 0.0
    %177 = vmatpush1.msra.mxu0 %v152
    %178 = vmatprep.subr.mxu0 0.0
    %179 = vmatpush1.msra.mxu0 %v151
    %180 = vmatprep.subr.mxu0 0.0
    %181 = vmatpush1.msra.mxu0 %v150
    %182 = vmatprep.subr.mxu0 0.0
    %183 = vmatpush1.msra.mxu0 %v149
    %184 = vmatprep.subr.mxu0 0.0
    %185 = vmatpush1.msra.mxu0 %v148
    %186 = vmatprep.subr.mxu0 0.0
    %187 = vmatpush1.msra.mxu0 %v147
    %188 = vmatprep.subr.mxu0 0.0
    %189 = vmatpush1.msra.mxu0 %v146
    %190 = vmatprep.subr.mxu0 0.0
    %191 = vmatpush1.msra.mxu0 %v145
    %192 = vmatprep.subr.mxu0 0.0
    %193 = vmatpush1.msra.mxu0 %v144
    %194 = vmatprep.subr.mxu0 0.0
    %195 = vmatpush1.msra.mxu0 %v143
    %196 = vmatprep.subr.mxu0 0.0
    %197 = vmatpush2.msra.mxu0 0.0
    %198 = vmatprep.subr.mxu0 0.0
    %199 = vmatpush2.msra.mxu0 0.0
    %200 = vmatprep.subr.mxu0 0.0
    %201 = vmatpush2.msra.mxu0 0.0
    %202 = vmatprep.subr.mxu0 0.0
    %203 = vmatpush2.msra.mxu0 0.0
    %204 = vmatprep.subr.mxu0 0.0
    %205 = vmatpush2.msra.mxu0 0.0
    %206 = vmatprep.subr.mxu0 0.0
    %207 = vmatpush2.msra.mxu0 0.0
    %208 = vmatprep.subr.mxu0 0.0
    %209 = vmatpush2.msra.mxu0 0.0
    %210 = vmatprep.subr.mxu0 0.0
    %211 = vmatpush2.msra.mxu0 0.0
    %212 = vmatprep.subr.mxu0 0.0
    %213 = vmatpush2.msra.mxu0 0.0
    %214 = vmatprep.subr.mxu0 0.0
    %215 = vmatpush2.msra.mxu0 0.0
    %216 = vmatprep.subr.mxu0 0.0
    %217 = vmatpush2.msra.mxu0 0.0
    %218 = vmatprep.subr.mxu0 0.0
    %219 = vmatpush2.msra.mxu0 0.0
    %220 = vmatprep.subr.mxu0 0.0
    %221 = vmatpush2.msra.mxu0 0.0
    %222 = vmatprep.subr.mxu0 0.0
    %223 = vmatpush2.msra.mxu0 0.0
    %224 = vmatprep.subr.mxu0 0.0
    %225 = vmatpush2.msra.mxu0 0.0
    %226 = vmatprep.subr.mxu0 0.0
    %227 = vmatpush2.msra.mxu0 0.0
    %228 = vmatprep.mubr.f32.mxu0 0.0
    %229 = vmatmul.mubr.f32.gmra.mxu0 %v142
    %v230 = vpop.f32.mrf.mxu0
    %v231 = vadd.f32 %v163, %v230
    %v232 = vpop.f32.mrf.mxu0
    %233 = vdwg.mxu0
    %vm234 = vcmask 23552
    %235 = vst.msk [vmem:[#allocation8] sm:$0xff] %vm234, %v231
    // Predicated region
    $region30: #{tpu_custom_call.1} parent=1 // pred_check
      _
    $region31: #{tpu_custom_call.1} parent=1 // pred_check_branch
      %237 = sbr.rel (0) target = $region33
    $region32: #{tpu_custom_call.1} parent=1 // pred_region
      %s239 = ssub.s32 128, 32
      %240 = vsyncadd [#allocation4], %s239
      %s241 = sshll.u32 [#allocation8], 4
      %s242 = int_to_ptr.vmem [resolvable:$true] %s241
      %247 = dma.vmem_to_hbm [thread:$0]  %s242, 32, %s4, [#allocation4], 32, 32, 2
    $region33: #{tpu_custom_call.1} parent=1 // pred_fallthru
      _
    // Predicated region
    $region34: #{tpu_custom_call.1} parent=1 // pred_check
      _
    $region35: #{tpu_custom_call.1} parent=1 // pred_check_branch
      %249 = sbr.rel (0) target = $region37
    $region36: #{tpu_custom_call.1} parent=1 // pred_region
      %250 = dma.done [#allocation4], 128
    $region37: #{tpu_custom_call.1} parent=1 // pred_fallthru
      _
    %251 = vsyncpa [#allocation3], 1
    %252 = vsyncpa [#allocation6], 1
    %253 = vsyncpa [#allocation4], 1

</llo_original>
